<compile_context>
chip_gen: v7x
topology: tpu7x:2x2x1
jax: 0.10.0
libtpu: 0.0.40
codegen_flags: <defaults>
</compile_context>

<pallas_src>
import functools

import jax
import jax.numpy as jnp
from jax import lax
from jax.experimental import pallas as pl
from jax.experimental.pallas import tpu as pltpu


def _block_kernel(x_ref, w1_ref, b1_ref, w2_ref, b2_ref, o_ref, *, length):
    """One batch element in (C, Lp) layout: channels on sublanes, length on lanes.

    x_ref : (1, Cin, Lp)   f32 input (length zero-padded to Lp)
    w*_ref: (Cout, 3*Cin)  conv weights with BN scale folded in (compute dtype)
    b*_ref: (Cout, 1)      BN shift (f32)
    o_ref : (1, Cout, Lp)
    """
    x = x_ref[0].astype(jnp.float32)  # (Cin, Lp)

    def conv3_bn(inp, w_ref, b_ref):
        # inp: (Cin, Lp) f32. Conv1d k=3, stride=1, padding=1, no bias, BN scale folded.
        lp = inp.shape[1]
        idx = lax.broadcasted_iota(jnp.int32, inp.shape, 1)  # lane (length) index
        # Shifted copies via XLU roll; zero the true-boundary columns (conv zero padding).
        left = jnp.where(idx == 0, 0.0, pltpu.roll(inp, shift=1, axis=1))            # inp[:, l-1]
        right = jnp.where(idx == length - 1, 0.0, pltpu.roll(inp, shift=lp - 1, axis=1))  # inp[:, l+1]
        # Fused 3-tap conv: single matmul with a 3*Cin contraction dim.
        stk = jnp.concatenate([left, inp, right], axis=0)                             # (3*Cin, Lp)
        out = jnp.dot(w_ref[...], stk.astype(w_ref.dtype),
                      preferred_element_type=jnp.float32)                             # (Cout, Lp)
        return out + b_ref[...]                                                       # BN shift

    h = jnp.maximum(conv3_bn(x, w1_ref, b1_ref), 0.0)   # conv1 + bn1 + relu
    out = conv3_bn(h, w2_ref, b2_ref)                   # conv2 + bn2
    out = jnp.maximum(out + x, 0.0)                     # residual (stride=1, downsample=None) + relu
    o_ref[0] = out.astype(o_ref.dtype)


def basic_block_3x3(x_ncl, w1, g1, be1, m1, v1, w2, g2, be2, m2, v2,
                    eps=1e-5, compute_dtype=jnp.float32):
    """x_ncl: (N, C, L) float32.  w*: (Cout, Cin, 3) PyTorch Conv1d weights (bias=False).

    compute_dtype: dtype of the matmul operands (jnp.bfloat16 recommended on v6e/v7x);
    accumulation and all elementwise work stay float32.
    """
    N, C, L = x_ncl.shape
    Cout, Cin, K = w1.shape
    assert K == 3 and Cin == C
    assert Cout == C, "residual add requires planes == inplanes (downsample is None)"
    assert w2.shape == (C, C, 3)

    # Fold BN (inference-mode running stats) scale into the conv weights; keep only the
    # per-channel shift for the kernel. Weight columns are ordered tap-major (k, ci) to
    # match the [x(l-1); x(l); x(l+1)] sublane stacking inside the kernel.
    def fold(w, gamma, beta, mean, var):
        inv = gamma / jnp.sqrt(var + eps)                                   # (Cout,)
        w_stk = jnp.transpose(w, (0, 2, 1)).reshape(w.shape[0], 3 * w.shape[1])
        w_stk = (w_stk * inv[:, None]).astype(compute_dtype)                # (Cout, 3*Cin)
        shift = (beta - mean * inv).reshape(-1, 1).astype(jnp.float32)      # (Cout, 1)
        return w_stk, shift

    w1_stk, b1 = fold(w1, g1, be1, m1, v1)
    w2_stk, b2 = fold(w2, g2, be2, m2, v2)

    # Pad length up to a lane-dense multiple of 128 (zero padding; the kernel masks the
    # true boundary columns 0 and L-1, so the pad region never affects valid outputs).
    Lp = max(128, ((L + 127) // 128) * 128)
    x_p = jnp.pad(x_ncl, ((0, 0), (0, 0), (0, Lp - L)))

    kernel = functools.partial(_block_kernel, length=L)

    out_p = pl.pallas_call(
        kernel,
        out_shape=jax.ShapeDtypeStruct((N, C, Lp), x_ncl.dtype),
        grid_spec=pltpu.PrefetchScalarGridSpec(
            num_scalar_prefetch=0,
            grid=(N,),
            in_specs=[
                pl.BlockSpec((1, C, Lp), lambda n: (n, 0, 0)),   # x (one batch element)
                pl.BlockSpec((C, 3 * C), lambda n: (0, 0)),      # w1 (scale folded)
                pl.BlockSpec((C, 1), lambda n: (0, 0)),          # bn1 shift
                pl.BlockSpec((C, 3 * C), lambda n: (0, 0)),      # w2 (scale folded)
                pl.BlockSpec((C, 1), lambda n: (0, 0)),          # bn2 shift
            ],
            out_specs=pl.BlockSpec((1, C, Lp), lambda n: (n, 0, 0)),
        ),
        compiler_params=pltpu.CompilerParams(
            dimension_semantics=("parallel",),
            vmem_limit_bytes=48 * 1024 * 1024,   # headroom-safe on v7x's 64 MiB VMEM
        ),
    )(x_p, w1_stk, b1, w2_stk, b2)

    return out_p[:, :, :L]


def _ref_forward(x, w1, s1, b1, w2, s2, b2):
    # pure-JAX reference (NCL), for validation
    def conv(x, w):
        return jax.lax.conv_general_dilated(
            x, w, window_strides=(1,), padding=((1, 1),),
            dimension_numbers=('NCH', 'OIH', 'NCH'))
    out = conv(x, w1)
    out = out * s1[None, :, None] + b1[None, :, None]
    out = jnp.maximum(out, 0.0)
    out = conv(out, w2)
    out = out * s2[None, :, None] + b2[None, :, None]
    return jnp.maximum(out + x, 0.0)


if __name__ == "__main__":
    key = jax.random.PRNGKey(0)
    N, C, L = 2, 4, 16   # batch=2, inplanes3=planes=4, seq length=16
    ks = jax.random.split(key, 8)

    x = jax.random.normal(ks[0], (N, C, L), jnp.float32)
    # Conv1d weights: (out_channels, in_channels, kernel_size=3), bias=False
    w1 = jax.random.normal(ks[1], (C, C, 3), jnp.float32) * 0.3
    w2 = jax.random.normal(ks[2], (C, C, 3), jnp.float32) * 0.3
    # BatchNorm1d params / running stats (deterministic, nontrivial)
    g1 = 1.0 + 0.1 * jax.random.normal(ks[3], (C,), jnp.float32)
    be1 = 0.1 * jax.random.normal(ks[4], (C,), jnp.float32)
    m1 = 0.05 * jax.random.normal(ks[5], (C,), jnp.float32)
    v1 = jnp.abs(1.0 + 0.1 * jax.random.normal(ks[6], (C,), jnp.float32))
    g2 = 1.0 + 0.1 * jax.random.normal(ks[7], (C,), jnp.float32)
    be2 = jnp.zeros((C,), jnp.float32)
    m2 = jnp.zeros((C,), jnp.float32)
    v2 = jnp.ones((C,), jnp.float32)

    # f32 matmul path (exact check against reference)
    out = basic_block_3x3(x, w1, g1, be1, m1, v1, w2, g2, be2, m2, v2)
    out = jax.block_until_ready(out)

    eps = 1e-5
    s1 = g1 / jnp.sqrt(v1 + eps); b1 = be1 - m1 * s1
    s2 = g2 / jnp.sqrt(v2 + eps); b2 = be2 - m2 * s2
    ref = _ref_forward(x, w1, s1, b1, w2, s2, b2)
    assert out.shape == (N, C, L)
    err = float(jnp.max(jnp.abs(out - ref)))
    assert jnp.allclose(out, ref, atol=1e-4, rtol=1e-4), err

    # bf16 matmul-operand path (v6e/v7x recommendation); f32 accumulation + f32 epilogue
    out_bf16 = jax.block_until_ready(
        basic_block_3x3(x, w1, g1, be1, m1, v1, w2, g2, be2, m2, v2,
                        compute_dtype=jnp.bfloat16))
    assert out_bf16.shape == (N, C, L)
    assert float(jnp.max(jnp.abs(out_bf16 - ref))) < 0.5

    print("KERNEL_OK")
</pallas_src>

<mosaic_0001>
module attributes {stable_mosaic.version = 11 : i64} {
  func.func @_block_kernel(%arg0: i32, %arg1: memref<1x4x128xf32, #tpu.memory_space<vmem>>, %arg2: memref<4x12xf32, #tpu.memory_space<vmem>>, %arg3: memref<4x1xf32, #tpu.memory_space<vmem>>, %arg4: memref<4x12xf32, #tpu.memory_space<vmem>>, %arg5: memref<4x1xf32, #tpu.memory_space<vmem>>, %arg6: memref<1x4x128xf32, #tpu.memory_space<vmem>>) attributes {dimension_semantics = [#tpu.dimension_semantics<parallel>], iteration_bounds = array<i64: 2>, scalar_prefetch = 0 : i64, scratch_operands = 0 : i64, tpu.core_type = #tpu.core_type<tc>, window_params = [{transform_indices = @transform_0, window_bounds = array<i64: 1, 4, 128>}, {pipeline_mode = #tpu.pipeline_mode<synchronous>, transform_indices = @transform_1, window_bounds = array<i64: 4, 12>}, {pipeline_mode = #tpu.pipeline_mode<synchronous>, transform_indices = @transform_2, window_bounds = array<i64: 4, 1>}, {pipeline_mode = #tpu.pipeline_mode<synchronous>, transform_indices = @transform_3, window_bounds = array<i64: 4, 12>}, {pipeline_mode = #tpu.pipeline_mode<synchronous>, transform_indices = @transform_4, window_bounds = array<i64: 4, 1>}, {transform_indices = @transform_5, window_bounds = array<i64: 1, 4, 128>}]} {
    %c0 = arith.constant 0 : index
    %c0_0 = arith.constant 0 : index
    %c0_1 = arith.constant 0 : index
    %0 = vector.load %arg1[%c0, %c0_0, %c0_1] : memref<1x4x128xf32, #tpu.memory_space<vmem>>, vector<1x4x128xf32>
    %1 = vector.shape_cast %0 : vector<1x4x128xf32> to vector<4x128xf32>
    %2 = tpu.iota {dimensions = array<i32: 1>} : vector<4x128xi32>
    %c0_i32 = arith.constant 0 : i32
    %3 = vector.broadcast %c0_i32 : i32 to vector<4x128xi32>
    %4 = arith.cmpi eq, %2, %3 : vector<4x128xi32>
    %c1_i32 = arith.constant 1 : i32
    %5 = tpu.dynamic_rotate %1 by %c1_i32 dim 1 : vector<4x128xf32>, i32 -> vector<4x128xf32>
    %cst = arith.constant 0.000000e+00 : f32
    %6 = vector.broadcast %cst : f32 to vector<4x128xf32>
    %7 = arith.select %4, %6, %5 : vector<4x128xi1>, vector<4x128xf32>
    %c15_i32 = arith.constant 15 : i32
    %8 = vector.broadcast %c15_i32 : i32 to vector<4x128xi32>
    %9 = arith.cmpi eq, %2, %8 : vector<4x128xi32>
    %c127_i32 = arith.constant 127 : i32
    %10 = tpu.dynamic_rotate %1 by %c127_i32 dim 1 : vector<4x128xf32>, i32 -> vector<4x128xf32>
    %cst_2 = arith.constant 0.000000e+00 : f32
    %11 = vector.broadcast %cst_2 : f32 to vector<4x128xf32>
    %12 = arith.select %9, %11, %10 : vector<4x128xi1>, vector<4x128xf32>
    %13 = tpu.concatenate %7, %1, %12 in 0 : vector<4x128xf32>, vector<4x128xf32>, vector<4x128xf32> -> vector<12x128xf32>
    %c0_3 = arith.constant 0 : index
    %c0_4 = arith.constant 0 : index
    %14 = vector.load %arg2[%c0_3, %c0_4] : memref<4x12xf32, #tpu.memory_space<vmem>>, vector<4x12xf32>
    %cst_5 = arith.constant dense<0.000000e+00> : vector<4x128xf32>
    %15 = tpu.matmul %14, %13, %cst_5 {dimension_numbers = #tpu.dot_dimension_numbers<[1], [0], [0], [1], [0, 0, 1, 1], [], []>} : vector<4x12xf32>, vector<12x128xf32>, vector<4x128xf32> -> vector<4x128xf32>
    %c0_6 = arith.constant 0 : index
    %c0_7 = arith.constant 0 : index
    %16 = vector.load %arg3[%c0_6, %c0_7] : memref<4x1xf32, #tpu.memory_space<vmem>>, vector<4x1xf32>
    %17 = vector.broadcast %16 : vector<4x1xf32> to vector<4x128xf32>
    %18 = arith.addf %15, %17 : vector<4x128xf32>
    %cst_8 = arith.constant 0.000000e+00 : f32
    %19 = vector.broadcast %cst_8 : f32 to vector<4x128xf32>
    %20 = arith.maximumf %18, %19 : vector<4x128xf32>
    %21 = tpu.iota {dimensions = array<i32: 1>} : vector<4x128xi32>
    %c0_i32_9 = arith.constant 0 : i32
    %22 = vector.broadcast %c0_i32_9 : i32 to vector<4x128xi32>
    %23 = arith.cmpi eq, %21, %22 : vector<4x128xi32>
    %c1_i32_10 = arith.constant 1 : i32
    %24 = tpu.dynamic_rotate %20 by %c1_i32_10 dim 1 : vector<4x128xf32>, i32 -> vector<4x128xf32>
    %cst_11 = arith.constant 0.000000e+00 : f32
    %25 = vector.broadcast %cst_11 : f32 to vector<4x128xf32>
    %26 = arith.select %23, %25, %24 : vector<4x128xi1>, vector<4x128xf32>
    %c15_i32_12 = arith.constant 15 : i32
    %27 = vector.broadcast %c15_i32_12 : i32 to vector<4x128xi32>
    %28 = arith.cmpi eq, %21, %27 : vector<4x128xi32>
    %c127_i32_13 = arith.constant 127 : i32
    %29 = tpu.dynamic_rotate %20 by %c127_i32_13 dim 1 : vector<4x128xf32>, i32 -> vector<4x128xf32>
    %cst_14 = arith.constant 0.000000e+00 : f32
    %30 = vector.broadcast %cst_14 : f32 to vector<4x128xf32>
    %31 = arith.select %28, %30, %29 : vector<4x128xi1>, vector<4x128xf32>
    %32 = tpu.concatenate %26, %20, %31 in 0 : vector<4x128xf32>, vector<4x128xf32>, vector<4x128xf32> -> vector<12x128xf32>
    %c0_15 = arith.constant 0 : index
    %c0_16 = arith.constant 0 : index
    %33 = vector.load %arg4[%c0_15, %c0_16] : memref<4x12xf32, #tpu.memory_space<vmem>>, vector<4x12xf32>
    %cst_17 = arith.constant dense<0.000000e+00> : vector<4x128xf32>
    %34 = tpu.matmul %33, %32, %cst_17 {dimension_numbers = #tpu.dot_dimension_numbers<[1], [0], [0], [1], [0, 0, 1, 1], [], []>} : vector<4x12xf32>, vector<12x128xf32>, vector<4x128xf32> -> vector<4x128xf32>
    %c0_18 = arith.constant 0 : index
    %c0_19 = arith.constant 0 : index
    %35 = vector.load %arg5[%c0_18, %c0_19] : memref<4x1xf32, #tpu.memory_space<vmem>>, vector<4x1xf32>
    %36 = vector.broadcast %35 : vector<4x1xf32> to vector<4x128xf32>
    %37 = arith.addf %34, %36 : vector<4x128xf32>
    %38 = arith.addf %37, %1 : vector<4x128xf32>
    %cst_20 = arith.constant 0.000000e+00 : f32
    %39 = vector.broadcast %cst_20 : f32 to vector<4x128xf32>
    %40 = arith.maximumf %38, %39 : vector<4x128xf32>
    %c0_21 = arith.constant 0 : index
    %c0_22 = arith.constant 0 : index
    %c0_23 = arith.constant 0 : index
    %41 = vector.load %arg6[%c0_21, %c0_22, %c0_23] : memref<1x4x128xf32, #tpu.memory_space<vmem>>, vector<1x4x128xf32>
    %42 = vector.shape_cast %41 : vector<1x4x128xf32> to vector<4x128xf32>
    %43 = vector.shape_cast %40 : vector<4x128xf32> to vector<1x4x128xf32>
    tpu.vector_store %arg6[%c0_21, %c0_22, %c0_23], %43 {strides = array<i32>} : memref<1x4x128xf32, #tpu.memory_space<vmem>>, vector<1x4x128xf32>,
    return
  }
  func.func @transform_0(%arg0: i32) -> (i32, i32, i32) {
    %c0_i32 = arith.constant 0 : i32
    %c0_i32_0 = arith.constant 0 : i32
    %c0_i32_1 = arith.constant 0 : i32
    return %arg0, %c0_i32, %c0_i32_0 : i32, i32, i32
  }
  func.func @transform_1(%arg0: i32) -> (i32, i32) {
    %c0_i32 = arith.constant 0 : i32
    %c0_i32_0 = arith.constant 0 : i32
    %c0_i32_1 = arith.constant 0 : i32
    return %c0_i32, %c0_i32_0 : i32, i32
  }
  func.func @transform_2(%arg0: i32) -> (i32, i32) {
    %c0_i32 = arith.constant 0 : i32
    %c0_i32_0 = arith.constant 0 : i32
    %c0_i32_1 = arith.constant 0 : i32
    return %c0_i32, %c0_i32_0 : i32, i32
  }
  func.func @transform_3(%arg0: i32) -> (i32, i32) {
    %c0_i32 = arith.constant 0 : i32
    %c0_i32_0 = arith.constant 0 : i32
    %c0_i32_1 = arith.constant 0 : i32
    return %c0_i32, %c0_i32_0 : i32, i32
  }
  func.func @transform_4(%arg0: i32) -> (i32, i32) {
    %c0_i32 = arith.constant 0 : i32
    %c0_i32_0 = arith.constant 0 : i32
    %c0_i32_1 = arith.constant 0 : i32
    return %c0_i32, %c0_i32_0 : i32, i32
  }
  func.func @transform_5(%arg0: i32) -> (i32, i32, i32) {
    %c0_i32 = arith.constant 0 : i32
    %c0_i32_0 = arith.constant 0 : i32
    %c0_i32_1 = arith.constant 0 : i32
    return %arg0, %c0_i32, %c0_i32_0 : i32, i32, i32
  }
}

</mosaic_0001>

<llo_original>
// kernel: tpu_custom_call.1
$region0: #{tpu_custom_call.1}
  #allocation0 [shape = 'u32[]', space=smem, size = 0x4, offset = 0x4, fixed_abs, tag = 'smem constant byte address 0x4 - core index']
  #allocation1 [shape = 'u32[144,128]{1,0:T(1,128)}', space=vmem, size = 0x12000, scoped, tag = 'internal scratch']
  %s0 = inlined_call_operand.vmem [shape: f32[2,4,128], index: 0, kind: input, shape index: {}]
  %s1 = inlined_call_operand.vmem [shape: f32[4,12], index: 1, kind: input, shape index: {}]
  %s2 = inlined_call_operand.vmem [shape: f32[4,1], index: 2, kind: input, shape index: {}]
  %s3 = inlined_call_operand.vmem [shape: f32[4,12], index: 3, kind: input, shape index: {}]
  %s4 = inlined_call_operand.vmem [shape: f32[4,1], index: 4, kind: input, shape index: {}]
  %s5 = inlined_call_operand.hbm [shape: f32[2,4,128], index: 5, kind: output, shape index: {}]
  %s6 = sld [smem:[#allocation0]]
  $region53: #{tpu_custom_call.1} parent=0
    _
  %s8 = ssub.s32 1, %s6
  %s9 = scalar_select 0, %s8, %s6
  $region1: #{tpu_custom_call.1} parent=0
    #allocation2 [shape = 'u8[4096]{0}', space=vmem, size = 0x1000, scoped, tag = 'output window, operand 0']
    #allocation3 [shape = 's32[2]{0}', space=sflag, size = 0x8, scoped, tag = 'scoped memory for tpu_custom_call.1']
    %10 = vsyncpa [#allocation3], 0
    %s11 = scalar_lea.sflag [#allocation3], 1
    %12 = vsyncpa %s11, 0
    loop: start=0, step=1, limit=4
    $region2: #{tpu_custom_call.1} parent=1 // loop_pre_header
      _
    $region3: #{tpu_custom_call.1} parent=1 // loop_header
      %s14 = sphi 0, %s18
      %p15 = scmp.ge.s32.totalorder %s14, 4
      %s24 = sphi 0, %s26
      %s27 = sphi 0, %s24
      %s28 = sphi 0, %s27
      %s44 = sphi 0, %s28
      %s48 = sphi 0, %s48
      %s50 = sphi 0, %s48
      %s51 = sphi 0, %s50
      %s65 = sphi 0, %s51
      %s69 = sphi 0, %s69
      %s71 = sphi 0, %s69
      %s72 = sphi 0, %s71
      %s86 = sphi 0, %s72
      %s90 = sphi 0, %s90
      %s92 = sphi 0, %s90
      %s93 = sphi 0, %s92
      %s107 = sphi 0, %s93
      %s111 = sphi 0, %s111
      %s113 = sphi 0, %s111
      %s114 = sphi 0, %s113
      %s128 = sphi 0, %s114
      %s134 = sphi 0, %s136
      %s137 = sphi 0, %s134
      %s138 = sphi 0, %s137
      %s154 = sphi 0, %s138
    $region4: #{tpu_custom_call.1} parent=1 // loop_header_branch
      %17 = sbr.rel (%p15) target = $region8
    $region5: #{tpu_custom_call.1} parent=1 // loop_body
      %s19 = ssub.s32 %s14, 1
      %s20 = ssub.s32 %s14, 2
      %s21 = sadd.s32 %s14, 1
      %s22 = ssub.s32 %s14, %s21
      %p23 = scmp.eq.s32.totalorder %s22, 0
      %s25 = sadd.s32 %s24, 1
      %s26 = scalar_select %p23, %s24, %s25
      %p29 = pneg %p23
      %p30 = scmp.eq.s32.totalorder %s14, 1
      %p31 = por %p29, %p30
      %p32 = scmp.ne.s32.totalorder %s24, %s27
      %p33 = scmp.eq.s32.totalorder %s14, 0
      %p34 = por %p32, %p33
      %p35 = scmp.ne.s32.totalorder %s24, %s27
      %p36 = scmp.eq.s32.totalorder %s19, 1
      %p37 = por %p35, %p36
      %p38 = scmp.ne.s32.totalorder %s27, %s28
      %p39 = scmp.eq.s32.totalorder %s19, 0
      %p40 = por %p38, %p39
      %p41 = scmp.ne.s32.totalorder %s27, %s28
      %p42 = scmp.eq.s32.totalorder %s20, 1
      %p43 = por %p41, %p42
      %p45 = scmp.ne.s32.totalorder %s28, %s44
      %p46 = scmp.eq.s32.totalorder %s20, 0
      %p47 = por %p45, %p46
      %s49 = sadd.s32 %s48, 1
      %p52 = scmp.eq.s32.totalorder %s14, 1
      %p53 = scmp.ne.s32.totalorder %s48, %s50
      %p54 = scmp.eq.s32.totalorder %s14, 0
      %p55 = por %p53, %p54
      %p56 = scmp.ne.s32.totalorder %s48, %s50
      %p57 = scmp.eq.s32.totalorder %s19, 1
      %p58 = por %p56, %p57
      %p59 = scmp.ne.s32.totalorder %s50, %s51
      %p60 = scmp.eq.s32.totalorder %s19, 0
      %p61 = por %p59, %p60
      %p62 = scmp.ne.s32.totalorder %s50, %s51
      %p63 = scmp.eq.s32.totalorder %s20, 1
      %p64 = por %p62, %p63
      %p66 = scmp.ne.s32.totalorder %s51, %s65
      %p67 = scmp.eq.s32.totalorder %s20, 0
      %p68 = por %p66, %p67
      %s70 = sadd.s32 %s69, 1
      %p73 = scmp.eq.s32.totalorder %s14, 1
      %p74 = scmp.ne.s32.totalorder %s69, %s71
      %p75 = scmp.eq.s32.totalorder %s14, 0
      %p76 = por %p74, %p75
      %p77 = scmp.ne.s32.totalorder %s69, %s71
      %p78 = scmp.eq.s32.totalorder %s19, 1
      %p79 = por %p77, %p78
      %p80 = scmp.ne.s32.totalorder %s71, %s72
      %p81 = scmp.eq.s32.totalorder %s19, 0
      %p82 = por %p80, %p81
      %p83 = scmp.ne.s32.totalorder %s71, %s72
      %p84 = scmp.eq.s32.totalorder %s20, 1
      %p85 = por %p83, %p84
      %p87 = scmp.ne.s32.totalorder %s72, %s86
      %p88 = scmp.eq.s32.totalorder %s20, 0
      %p89 = por %p87, %p88
      %s91 = sadd.s32 %s90, 1
      %p94 = scmp.eq.s32.totalorder %s14, 1
      %p95 = scmp.ne.s32.totalorder %s90, %s92
      %p96 = scmp.eq.s32.totalorder %s14, 0
      %p97 = por %p95, %p96
      %p98 = scmp.ne.s32.totalorder %s90, %s92
      %p99 = scmp.eq.s32.totalorder %s19, 1
      %p100 = por %p98, %p99
      %p101 = scmp.ne.s32.totalorder %s92, %s93
      %p102 = scmp.eq.s32.totalorder %s19, 0
      %p103 = por %p101, %p102
      %p104 = scmp.ne.s32.totalorder %s92, %s93
      %p105 = scmp.eq.s32.totalorder %s20, 1
      %p106 = por %p104, %p105
      %p108 = scmp.ne.s32.totalorder %s93, %s107
      %p109 = scmp.eq.s32.totalorder %s20, 0
      %p110 = por %p108, %p109
      %s112 = sadd.s32 %s111, 1
      %p115 = scmp.eq.s32.totalorder %s14, 1
      %p116 = scmp.ne.s32.totalorder %s111, %s113
      %p117 = scmp.eq.s32.totalorder %s14, 0
      %p118 = por %p116, %p117
      %p119 = scmp.ne.s32.totalorder %s111, %s113
      %p120 = scmp.eq.s32.totalorder %s19, 1
      %p121 = por %p119, %p120
      %p122 = scmp.ne.s32.totalorder %s113, %s114
      %p123 = scmp.eq.s32.totalorder %s19, 0
      %p124 = por %p122, %p123
      %p125 = scmp.ne.s32.totalorder %s113, %s114
      %p126 = scmp.eq.s32.totalorder %s20, 1
      %p127 = por %p125, %p126
      %p129 = scmp.ne.s32.totalorder %s114, %s128
      %p130 = scmp.eq.s32.totalorder %s20, 0
      %p131 = por %p129, %p130
      %s132 = ssub.s32 %s14, %s21
      %p133 = scmp.eq.s32.totalorder %s132, 0
      %s135 = sadd.s32 %s134, 1
      %s136 = scalar_select %p133, %s134, %s135
      %p139 = pneg %p133
      %p140 = scmp.eq.s32.totalorder %s14, 1
      %p141 = por %p139, %p140
      %p142 = scmp.ne.s32.totalorder %s134, %s137
      %p143 = scmp.eq.s32.totalorder %s14, 0
      %p144 = por %p142, %p143
      %p145 = scmp.ne.s32.totalorder %s134, %s137
      %p146 = scmp.eq.s32.totalorder %s19, 1
      %p147 = por %p145, %p146
      %p148 = scmp.ne.s32.totalorder %s137, %s138
      %p149 = scmp.eq.s32.totalorder %s19, 0
      %p150 = por %p148, %p149
      %p151 = scmp.ne.s32.totalorder %s137, %s138
      %p152 = scmp.eq.s32.totalorder %s20, 1
      %p153 = por %p151, %p152
      %p155 = scmp.ne.s32.totalorder %s138, %s154
      %p156 = scmp.eq.s32.totalorder %s20, 0
      %p157 = por %p155, %p156
      %p158 = scmp.le.s32.totalorder 1, %s14
      %p159 = scmp.lt.s32.totalorder %s14, 3
      %p160 = pnand %p158, %p159
      %p161 = pneg %p160
      // Predicated region
      $region9: #{tpu_custom_call.1} parent=5 // pred_check
        _
      $region10: #{tpu_custom_call.1} parent=5 // pred_check_branch
        %163 = sbr.rel (%p160) target = $region12
      $region11: #{tpu_custom_call.1} parent=5 // pred_region
        %s164 = ssub.s32 %s14, 1
        // Predicated region
        $region13: #{tpu_custom_call.1} parent=11 // pred_check
          %p165 = pneg %p61
        $region14: #{tpu_custom_call.1} parent=11 // pred_check_branch
          %167 = sbr.rel (%p165) target = $region16
        $region15: #{tpu_custom_call.1} parent=11 // pred_region
          _
        $region16: #{tpu_custom_call.1} parent=11 // pred_fallthru
          _
        // Predicated region
        $region17: #{tpu_custom_call.1} parent=11 // pred_check
          %p168 = pneg %p82
        $region18: #{tpu_custom_call.1} parent=11 // pred_check_branch
          %170 = sbr.rel (%p168) target = $region20
        $region19: #{tpu_custom_call.1} parent=11 // pred_region
          _
        $region20: #{tpu_custom_call.1} parent=11 // pred_fallthru
          _
        // Predicated region
        $region21: #{tpu_custom_call.1} parent=11 // pred_check
          %p171 = pneg %p103
        $region22: #{tpu_custom_call.1} parent=11 // pred_check_branch
          %173 = sbr.rel (%p171) target = $region24
        $region23: #{tpu_custom_call.1} parent=11 // pred_region
          _
        $region24: #{tpu_custom_call.1} parent=11 // pred_fallthru
          _
        // Predicated region
        $region25: #{tpu_custom_call.1} parent=11 // pred_check
          %p174 = pneg %p124
        $region26: #{tpu_custom_call.1} parent=11 // pred_check_branch
          %176 = sbr.rel (%p174) target = $region28
        $region27: #{tpu_custom_call.1} parent=11 // pred_region
          _
        $region28: #{tpu_custom_call.1} parent=11 // pred_fallthru
          _
      $region12: #{tpu_custom_call.1} parent=5 // pred_fallthru
        _
      %p177 = scmp.lt.s32.totalorder %s14, 2
      // Predicated region
      $region29: #{tpu_custom_call.1} parent=5 // pred_check
        %p178 = pneg %p177
      $region30: #{tpu_custom_call.1} parent=5 // pred_check_branch
        %180 = sbr.rel (%p178) target = $region32
      $region31: #{tpu_custom_call.1} parent=5 // pred_region
        // Predicated region
        $region33: #{tpu_custom_call.1} parent=31 // pred_check
          %p181 = pneg %p34
        $region34: #{tpu_custom_call.1} parent=31 // pred_check_branch
          %183 = sbr.rel (%p181) target = $region36
        $region35: #{tpu_custom_call.1} parent=31 // pred_region
          %p184 = scmp.lt.s32.totalorder %s14, 1
          %s185 = scalar_select %p184, %s14, 1
          %s186 = smul.addr %s185, 4
          %s187 = scalar_lea.vmem %s0, %s186
        $region36: #{tpu_custom_call.1} parent=31 // pred_fallthru
          _
      $region32: #{tpu_custom_call.1} parent=5 // pred_fallthru
        _
      %p188 = scmp.le.s32.totalorder 1, %s14
      %p189 = scmp.lt.s32.totalorder %s14, 3
      %p190 = pnand %p188, %p189
      %p191 = pneg %p190
      // Predicated region
      $region37: #{tpu_custom_call.1} parent=5 // pred_check
        _
      $region38: #{tpu_custom_call.1} parent=5 // pred_check_branch
        %193 = sbr.rel (%p190) target = $region40
      $region39: #{tpu_custom_call.1} parent=5 // pred_region
        %s194 = ssub.s32 %s14, 1
        %p195 = scmp.lt.s32.totalorder %s19, 1
        %s196 = scalar_select %p195, %s19, 1
        %s197 = smul.addr %s196, 4
        %s198 = scalar_lea.vmem %s0, %s197
        %p199 = pneg %p40
        %p200 = pneg %p37
        %p201 = pneg %p61
        %p202 = pneg %p58
        %p203 = pneg %p82
        %p204 = pneg %p79
        %p205 = pneg %p103
        %p206 = pneg %p100
        %p207 = pneg %p124
        %p208 = pneg %p121
        %p209 = pneg %p150
        %p210 = pneg %p147
        %s211 = sand.u32 %s137, 1
        %s212 = scalar_lea.sflag [#allocation3], %s211
        %s213 = sand.u32 %s137, 1
        %s214 = smul.addr %s213, 4
        %s215 = scalar_lea.vmem [#allocation2], %s214
        %p216 = scmp.lt.s32.totalorder %s19, 1
        %s217 = scalar_select %p216, %s19, 1
        %s218 = smul.addr %s217, 4
        %s219 = scalar_lea.vmem %s0, %s218
        %v220 = vld [vmem:[%s219] sm:$0xf]
        %v221 = vlaneseq
        %v222 = vand.u32 %v221, 127
        %vm223 = vcmp.eq.s32.totalorder %v222, 0
        %224 = vrot.lane.b32.xlu0 %v220, 1
        %v225 = vpop.permute.xlu0 %224
        %v226 = vsel %vm223, 0.0, %v225
        %vm227 = vcmp.eq.s32.totalorder %v222, 15
        %228 = vrot.lane.b32.xlu0 %v220, 127
        %v229 = vpop.permute.xlu0 %228
        %v230 = vsel %vm227, 0.0, %v229
        %v232 = vrot.slane %v220, 4
        %vm234 = vcmask 1043456
        %v235 = vsel %vm234, %v226, %v232
        %v236 = vld [vmem:[%s1] sm:$0xf]
        %v237 = vld [vmem:[%s2] sm:$0xf]
        %239 = vset.pattern.permute.xlu0 0
        %240 = vperm.xlu0 %239, %v237
        %v241 = vpop.permute.xlu0 %240
        %vm243 = vcmask 97280
        %v245 = vsel %vm243, %v236, 0
        %v248 = vsel %vm234, %v230, 0
        %250 = vmatprep.subr.mxu0 0.0
        %251 = vmatpush1.msra.mxu0 %v235
        %252 = vmatprep.subr.mxu0 0.0
        %253 = vmatpush1.msra.mxu0 %v248
        %254 = vmatprep.subr.mxu0 0.0
        %255 = vmatpush1.msra.mxu0 0.0
        %256 = vmatprep.subr.mxu0 0.0
        %257 = vmatpush1.msra.mxu0 0.0
        %258 = vmatprep.subr.mxu0 0.0
        %259 = vmatpush1.msra.mxu0 0.0
        %260 = vmatprep.subr.mxu0 0.0
        %261 = vmatpush1.msra.mxu0 0.0
        %262 = vmatprep.subr.mxu0 0.0
        %263 = vmatpush1.msra.mxu0 0.0
        %264 = vmatprep.subr.mxu0 0.0
        %265 = vmatpush1.msra.mxu0 0.0
        %266 = vmatprep.subr.mxu0 0.0
        %267 = vmatpush1.msra.mxu0 0.0
        %268 = vmatprep.subr.mxu0 0.0
        %269 = vmatpush1.msra.mxu0 0.0
        %270 = vmatprep.subr.mxu0 0.0
        %271 = vmatpush1.msra.mxu0 0.0
        %272 = vmatprep.subr.mxu0 0.0
        %273 = vmatpush1.msra.mxu0 0.0
        %274 = vmatprep.subr.mxu0 0.0
        %275 = vmatpush1.msra.mxu0 0.0
        %276 = vmatprep.subr.mxu0 0.0
        %277 = vmatpush1.msra.mxu0 0.0
        %278 = vmatprep.subr.mxu0 0.0
        %279 = vmatpush1.msra.mxu0 0.0
        %280 = vmatprep.subr.mxu0 0.0
        %281 = vmatpush1.msra.mxu0 0.0
        %282 = vmatprep.subr.mxu0 0.0
        %283 = vmatpush1.msra.mxu0 0.0
        %284 = vmatprep.subr.mxu0 0.0
        %285 = vmatpush1.msra.mxu0 0.0
        %286 = vmatprep.subr.mxu0 0.0
        %287 = vmatpush1.msra.mxu0 0.0
        %288 = vmatprep.subr.mxu0 0.0
        %289 = vmatpush1.msra.mxu0 0.0
        %290 = vmatprep.subr.mxu0 0.0
        %291 = vmatpush1.msra.mxu0 0.0
        %292 = vmatprep.subr.mxu0 0.0
        %293 = vmatpush1.msra.mxu0 0.0
        %294 = vmatprep.subr.mxu0 0.0
        %295 = vmatpush1.msra.mxu0 0.0
        %296 = vmatprep.subr.mxu0 0.0
        %297 = vmatpush1.msra.mxu0 0.0
        %298 = vmatprep.subr.mxu0 0.0
        %299 = vmatpush1.msra.mxu0 0.0
        %300 = vmatprep.subr.mxu0 0.0
        %301 = vmatpush1.msra.mxu0 0.0
        %302 = vmatprep.subr.mxu0 0.0
        %303 = vmatpush1.msra.mxu0 0.0
        %304 = vmatprep.subr.mxu0 0.0
        %305 = vmatpush1.msra.mxu0 0.0
        %306 = vmatprep.subr.mxu0 0.0
        %307 = vmatpush1.msra.mxu0 0.0
        %308 = vmatprep.subr.mxu0 0.0
        %309 = vmatpush1.msra.mxu0 0.0
        %310 = vmatprep.subr.mxu0 0.0
        %311 = vmatpush1.msra.mxu0 0.0
        %312 = vmatprep.subr.mxu0 0.0
        %313 = vmatpush1.msra.mxu0 0.0
        %314 = vmatprep.mubr.f32.mxu0 0.0
        %315 = vmatmul.mubr.f32.gmra.mrb[0].mxu0 %v245
        %v316 = vpop.f32.mrb[0].mxu0
        %v317 = vadd.f32 %v241, %v316
        %v318 = vpop.f32.mrb[0].mxu0
        %319 = vdwg.mxu0
        %v320 = vmax.f32 %v317, 0.0
        %321 = vrot.lane.b32.xlu0 %v320, 1
        %v322 = vpop.permute.xlu0 %321
        %v323 = vsel %vm223, 0.0, %v322
        %324 = vrot.lane.b32.xlu0 %v320, 127
        %v325 = vpop.permute.xlu0 %324
        %v326 = vsel %vm227, 0.0, %v325
        %v328 = vrot.slane %v320, 4
        %v330 = vsel %vm234, %v323, %v328
        %v331 = vld [vmem:[%s3] sm:$0xf]
        %v332 = vld [vmem:[%s4] sm:$0xf]
        %334 = vset.pattern.permute.xlu0 0
        %335 = vperm.xlu0 %334, %v332
        %v336 = vpop.permute.xlu0 %335
        %v339 = vsel %vm243, %v331, 0
        %v342 = vsel %vm234, %v326, 0
        %344 = vmatprep.subr.mxu0 0.0
        %345 = vmatpush1.msra.mxu0 %v330
        %346 = vmatprep.subr.mxu0 0.0
        %347 = vmatpush1.msra.mxu0 %v342
        %348 = vmatprep.subr.mxu0 0.0
        %349 = vmatpush1.msra.mxu0 0.0
        %350 = vmatprep.subr.mxu0 0.0
        %351 = vmatpush1.msra.mxu0 0.0
        %352 = vmatprep.subr.mxu0 0.0
        %353 = vmatpush1.msra.mxu0 0.0
        %354 = vmatprep.subr.mxu0 0.0
        %355 = vmatpush1.msra.mxu0 0.0
        %356 = vmatprep.subr.mxu0 0.0
        %357 = vmatpush1.msra.mxu0 0.0
        %358 = vmatprep.subr.mxu0 0.0
        %359 = vmatpush1.msra.mxu0 0.0
        %360 = vmatprep.subr.mxu0 0.0
        %361 = vmatpush1.msra.mxu0 0.0
        %362 = vmatprep.subr.mxu0 0.0
        %363 = vmatpush1.msra.mxu0 0.0
        %364 = vmatprep.subr.mxu0 0.0
        %365 = vmatpush1.msra.mxu0 0.0
        %366 = vmatprep.subr.mxu0 0.0
        %367 = vmatpush1.msra.mxu0 0.0
        %368 = vmatprep.subr.mxu0 0.0
        %369 = vmatpush1.msra.mxu0 0.0
        %370 = vmatprep.subr.mxu0 0.0
        %371 = vmatpush1.msra.mxu0 0.0
        %372 = vmatprep.subr.mxu0 0.0
        %373 = vmatpush1.msra.mxu0 0.0
        %374 = vmatprep.subr.mxu0 0.0
        %375 = vmatpush1.msra.mxu0 0.0
        %376 = vmatprep.subr.mxu0 0.0
        %377 = vmatpush1.msra.mxu0 0.0
        %378 = vmatprep.subr.mxu0 0.0
        %379 = vmatpush1.msra.mxu0 0.0
        %380 = vmatprep.subr.mxu0 0.0
        %381 = vmatpush1.msra.mxu0 0.0
        %382 = vmatprep.subr.mxu0 0.0
        %383 = vmatpush1.msra.mxu0 0.0
        %384 = vmatprep.subr.mxu0 0.0
        %385 = vmatpush1.msra.mxu0 0.0
        %386 = vmatprep.subr.mxu0 0.0
        %387 = vmatpush1.msra.mxu0 0.0
        %388 = vmatprep.subr.mxu0 0.0
        %389 = vmatpush1.msra.mxu0 0.0
        %390 = vmatprep.subr.mxu0 0.0
        %391 = vmatpush1.msra.mxu0 0.0
        %392 = vmatprep.subr.mxu0 0.0
        %393 = vmatpush1.msra.mxu0 0.0
        %394 = vmatprep.subr.mxu0 0.0
        %395 = vmatpush1.msra.mxu0 0.0
        %396 = vmatprep.subr.mxu0 0.0
        %397 = vmatpush1.msra.mxu0 0.0
        %398 = vmatprep.subr.mxu0 0.0
        %399 = vmatpush1.msra.mxu0 0.0
        %400 = vmatprep.subr.mxu0 0.0
        %401 = vmatpush1.msra.mxu0 0.0
        %402 = vmatprep.subr.mxu0 0.0
        %403 = vmatpush1.msra.mxu0 0.0
        %404 = vmatprep.subr.mxu0 0.0
        %405 = vmatpush1.msra.mxu0 0.0
        %406 = vmatprep.subr.mxu0 0.0
        %407 = vmatpush1.msra.mxu0 0.0
        %408 = vmatprep.mubr.f32.mxu0 0.0
        %409 = vmatmul.mubr.f32.gmra.mrb[0].mxu0 %v339
        %v410 = vpop.f32.mrb[0].mxu0
        %v411 = vadd.f32 %v336, %v410
        %v412 = vpop.f32.mrb[0].mxu0
        %413 = vdwg.mxu0
        %v414 = vadd.f32 %v411, %v220
        %v415 = vmax.f32 %v414, 0.0
        %416 = vst [vmem:[%s215] sm:$0xf] %v415
        %s417 = sand.u32 %s137, 1
        %s418 = scalar_lea.sflag [#allocation3], %s417
        %s419 = sand.u32 %s137, 1
        %s420 = smul.addr %s419, 4
        %s421 = scalar_lea.vmem [#allocation2], %s420
        // Predicated region
        $region41: #{tpu_custom_call.1} parent=39 // pred_check
          %p422 = pneg %p147
        $region42: #{tpu_custom_call.1} parent=39 // pred_check_branch
          %424 = sbr.rel (%p422) target = $region44
        $region43: #{tpu_custom_call.1} parent=39 // pred_region
          %s426 = ssub.s32 64, 64
          %427 = vsyncadd %s418, %s426
          %s428 = smul.addr %s19, 64
          %s429 = scalar_lea.hbm %s5, %s428
          %s431 = sshll.u32 %s421, 4
          %s432 = int_to_ptr.vmem [resolvable:$true] %s431
          %434 = dma.vmem_to_hbm [thread:$0]  %s432, 64, %s429, %s418
        $region44: #{tpu_custom_call.1} parent=39 // pred_fallthru
          _
      $region40: #{tpu_custom_call.1} parent=5 // pred_fallthru
        _
      %p435 = scmp.le.s32.totalorder 2, %s14
      // Predicated region
      $region45: #{tpu_custom_call.1} parent=5 // pred_check
        %p436 = pneg %p435
      $region46: #{tpu_custom_call.1} parent=5 // pred_check_branch
        %438 = sbr.rel (%p436) target = $region48
      $region47: #{tpu_custom_call.1} parent=5 // pred_region
        %s439 = ssub.s32 %s14, 2
        // Predicated region
        $region49: #{tpu_custom_call.1} parent=47 // pred_check
          %p440 = pneg %p153
        $region50: #{tpu_custom_call.1} parent=47 // pred_check_branch
          %442 = sbr.rel (%p440) target = $region52
        $region51: #{tpu_custom_call.1} parent=47 // pred_region
          %s443 = sand.u32 %s138, 1
          %s444 = scalar_lea.sflag [#allocation3], %s443
          %s445 = sand.u32 %s138, 1
          %s446 = smul.addr %s445, 4
          %s447 = scalar_lea.vmem [#allocation2], %s446
          %448 = dma.done %s444, 64
        $region52: #{tpu_custom_call.1} parent=47 // pred_fallthru
          _
      $region48: #{tpu_custom_call.1} parent=5 // pred_fallthru
        _
    $region6: #{tpu_custom_call.1} parent=1 // loop_footer
      %s18 = sadd.s32 1, %s14
    $region7: #{tpu_custom_call.1} parent=1 // loop_footer_branch
      %13 = sbr.rel target = $region3
    $region8: #{tpu_custom_call.1} parent=1 // loop_exit
      _
    %449 = vsyncpa [#allocation3], 1
    %s450 = scalar_lea.sflag [#allocation3], 1
    %451 = vsyncpa %s450, 1

</llo_original>
